<compile_context>
chip_gen: v5e
topology: v5e:2x2
jax: 0.10.0
libtpu: 0.0.40
codegen_flags: <defaults>
</compile_context>

<pallas_src>
import functools

import jax
import jax.numpy as jnp
from jax.experimental import pallas as pl
from jax.experimental.pallas import tpu as pltpu


def _round_up(a, m):
    return (a + m - 1) // m * m


def pgnet_kernel(x_ref, w1_ref, b1_ref, w2_ref, b2_ref, w3_ref, b3_ref, o_ref):
    # x tile: (TB, in_dim) bf16; weights bf16; biases f32; output f32.
    x = x_ref[...]

    # fc1 + ReLU   (bf16 x bf16 -> f32 acc)
    h1 = jnp.dot(x, w1_ref[...], preferred_element_type=jnp.float32) + b1_ref[...]
    h1 = jnp.maximum(h1, 0.0)

    # fc2 + ReLU
    h2 = jnp.dot(h1.astype(w2_ref.dtype), w2_ref[...],
                 preferred_element_type=jnp.float32) + b2_ref[...]
    h2 = jnp.maximum(h2, 0.0)

    # fc3 + Sigmoid (f32 math on EUP: exp + approximate reciprocal)
    z = jnp.dot(h2.astype(w3_ref.dtype), w3_ref[...],
                preferred_element_type=jnp.float32) + b3_ref[...]
    o_ref[...] = pl.reciprocal(1.0 + jnp.exp(-z), approx=True)


def pgnet_forward(x, params, *, block_b=1024):
    """x: [B, input_dim] f32. params: (w1,b1,w2,b2,w3,b3), W as [in, out]."""
    w1, b1, w2, b2, w3, b3 = params
    B, in_dim = x.shape
    hidden = w1.shape[1]
    out_dim = w3.shape[1]

    # Batch tile: multiple of 8 sublanes; cap at block_b for VMEM friendliness.
    TB = min(block_b, _round_up(B, 8))
    B_pad = _round_up(B, TB)
    OUT_PAD = 128  # lane-dense output width

    # Pad + cast MXU operands to bf16; keep biases in f32.
    x_p = jnp.pad(x, ((0, B_pad - B), (0, 0))).astype(jnp.bfloat16)
    w1b = w1.astype(jnp.bfloat16)
    w2b = w2.astype(jnp.bfloat16)
    w3b = jnp.pad(w3, ((0, 0), (0, OUT_PAD - out_dim))).astype(jnp.bfloat16)
    b1f = b1.astype(jnp.float32)
    b2f = b2.astype(jnp.float32)
    b3f = jnp.pad(b3.astype(jnp.float32), ((0, 0), (0, OUT_PAD - out_dim)))

    grid = (B_pad // TB,)

    def const_spec(a):
        # Full-array block, same block every grid step -> stays VMEM-resident.
        return pl.BlockSpec(a.shape, lambda i: tuple(0 for _ in a.shape))

    cost = pl.CostEstimate(
        flops=2 * B_pad * (in_dim * hidden + hidden * hidden + hidden * OUT_PAD),
        transcendentals=B_pad * OUT_PAD,
        bytes_accessed=int(
            x_p.size * 2 + w1b.size * 2 + w2b.size * 2 + w3b.size * 2
            + b1f.size * 4 + b2f.size * 4 + b3f.size * 4
            + B_pad * OUT_PAD * 4
        ),
    )

    out_padded = pl.pallas_call(
        pgnet_kernel,
        out_shape=jax.ShapeDtypeStruct((B_pad, OUT_PAD), jnp.float32),
        grid=grid,
        in_specs=[
            pl.BlockSpec((TB, in_dim), lambda i: (i, 0)),   # x: batch-tiled
            const_spec(w1b), const_spec(b1f),
            const_spec(w2b), const_spec(b2f),
            const_spec(w3b), const_spec(b3f),
        ],
        out_specs=pl.BlockSpec((TB, OUT_PAD), lambda i: (i, 0)),
        compiler_params=pltpu.CompilerParams(
            dimension_semantics=("parallel",),
        ),
        cost_estimate=cost,
    )(x_p, w1b, b1f, w2b, b2f, w3b, b3f)

    # Strip batch padding and lane padding.
    return out_padded[:B, :out_dim]


def init_pgnet_params(key, input_dim, output_dim, hidden_dim=128):
    """Deterministic init mimicking PyTorch nn.Linear (uniform(-1/sqrt(fan_in), +))."""
    ks = jax.random.split(key, 6)

    def linear(kw, kb, fan_in, fan_out):
        bound = 1.0 / jnp.sqrt(jnp.float32(fan_in))
        w = jax.random.uniform(kw, (fan_in, fan_out), jnp.float32, -bound, bound)
        b = jax.random.uniform(kb, (1, fan_out), jnp.float32, -bound, bound)
        return w, b

    w1, b1 = linear(ks[0], ks[1], input_dim, hidden_dim)
    w2, b2 = linear(ks[2], ks[3], hidden_dim, hidden_dim)
    w3, b3 = linear(ks[4], ks[5], hidden_dim, output_dim)
    return (w1, b1, w2, b2, w3, b3)


def pgnet_reference(x, params):
    """Pure-JAX f32 reference matching the PyTorch module semantics."""
    w1, b1, w2, b2, w3, b3 = params
    h1 = jnp.maximum(x @ w1 + b1, 0.0)
    h2 = jnp.maximum(h1 @ w2 + b2, 0.0)
    return jax.nn.sigmoid(h2 @ w3 + b3)


if __name__ == "__main__":
    # Small shapes consistent with the module: policy net over a 4-dim state,
    # 2 actions, hidden=32, batch=8. (The kernel is designed to amortize over
    # much larger RL batches; the same code path handles both.)
    batch, input_dim, output_dim, hidden_dim = 8, 4, 2, 32

    key = jax.random.PRNGKey(0)
    k_x, k_p = jax.random.split(key)
    x = jax.random.normal(k_x, (batch, input_dim), dtype=jnp.float32)
    params = init_pgnet_params(k_p, input_dim, output_dim, hidden_dim)

    out = jax.block_until_ready(pgnet_forward(x, params))
    ref = pgnet_reference(x, params)

    assert out.shape == (batch, output_dim)
    # bf16 MXU operands + approx reciprocal -> slightly looser tolerance vs f32 ref.
    assert jnp.allclose(out, ref, atol=2e-2, rtol=0.0), "mismatch vs reference"

    print("KERNEL_OK")
</pallas_src>

<mosaic_0001>
module attributes {stable_mosaic.version = 11 : i64} {
  func.func @pgnet_kernel(%arg0: i32, %arg1: memref<8x4xbf16, #tpu.memory_space<vmem>>, %arg2: memref<4x32xbf16, #tpu.memory_space<vmem>>, %arg3: memref<1x32xf32, #tpu.memory_space<vmem>>, %arg4: memref<32x32xbf16, #tpu.memory_space<vmem>>, %arg5: memref<1x32xf32, #tpu.memory_space<vmem>>, %arg6: memref<32x128xbf16, #tpu.memory_space<vmem>>, %arg7: memref<1x128xf32, #tpu.memory_space<vmem>>, %arg8: memref<8x128xf32, #tpu.memory_space<vmem>>) attributes {dimension_semantics = [#tpu.dimension_semantics<parallel>], iteration_bounds = array<i64: 1>, scalar_prefetch = 0 : i64, scratch_operands = 0 : i64, tpu.core_type = #tpu.core_type<tc>, window_params = [{transform_indices = @transform_0, window_bounds = array<i64: 8, 4>}, {pipeline_mode = #tpu.pipeline_mode<synchronous>, transform_indices = @transform_1, window_bounds = array<i64: 4, 32>}, {pipeline_mode = #tpu.pipeline_mode<synchronous>, transform_indices = @transform_2, window_bounds = array<i64: 1, 32>}, {pipeline_mode = #tpu.pipeline_mode<synchronous>, transform_indices = @transform_3, window_bounds = array<i64: 32, 32>}, {pipeline_mode = #tpu.pipeline_mode<synchronous>, transform_indices = @transform_4, window_bounds = array<i64: 1, 32>}, {pipeline_mode = #tpu.pipeline_mode<synchronous>, transform_indices = @transform_5, window_bounds = array<i64: 32, 128>}, {pipeline_mode = #tpu.pipeline_mode<synchronous>, transform_indices = @transform_6, window_bounds = array<i64: 1, 128>}, {transform_indices = @transform_7, window_bounds = array<i64: 8, 128>}]} {
    %c0 = arith.constant 0 : index
    %c0_0 = arith.constant 0 : index
    %0 = vector.load %arg1[%c0, %c0_0] : memref<8x4xbf16, #tpu.memory_space<vmem>>, vector<8x4xbf16>
    %c0_1 = arith.constant 0 : index
    %c0_2 = arith.constant 0 : index
    %1 = vector.load %arg2[%c0_1, %c0_2] : memref<4x32xbf16, #tpu.memory_space<vmem>>, vector<4x32xbf16>
    %cst = arith.constant dense<0.000000e+00> : vector<8x32xf32>
    %2 = tpu.matmul %0, %1, %cst {dimension_numbers = #tpu.dot_dimension_numbers<[1], [0], [0], [1], [0, 0, 1, 1], [], []>} : vector<8x4xbf16>, vector<4x32xbf16>, vector<8x32xf32> -> vector<8x32xf32>
    %c0_3 = arith.constant 0 : index
    %c0_4 = arith.constant 0 : index
    %3 = vector.load %arg3[%c0_3, %c0_4] : memref<1x32xf32, #tpu.memory_space<vmem>>, vector<1x32xf32>
    %4 = vector.broadcast %3 : vector<1x32xf32> to vector<8x32xf32>
    %5 = arith.addf %2, %4 : vector<8x32xf32>
    %cst_5 = arith.constant 0.000000e+00 : f32
    %6 = vector.broadcast %cst_5 : f32 to vector<8x32xf32>
    %7 = arith.maximumf %5, %6 : vector<8x32xf32>
    %8 = arith.truncf %7 : vector<8x32xf32> to vector<8x32xbf16>
    %c0_6 = arith.constant 0 : index
    %c0_7 = arith.constant 0 : index
    %9 = vector.load %arg4[%c0_6, %c0_7] : memref<32x32xbf16, #tpu.memory_space<vmem>>, vector<32x32xbf16>
    %cst_8 = arith.constant dense<0.000000e+00> : vector<8x32xf32>
    %10 = tpu.matmul %8, %9, %cst_8 {dimension_numbers = #tpu.dot_dimension_numbers<[1], [0], [0], [1], [0, 0, 1, 1], [], []>} : vector<8x32xbf16>, vector<32x32xbf16>, vector<8x32xf32> -> vector<8x32xf32>
    %c0_9 = arith.constant 0 : index
    %c0_10 = arith.constant 0 : index
    %11 = vector.load %arg5[%c0_9, %c0_10] : memref<1x32xf32, #tpu.memory_space<vmem>>, vector<1x32xf32>
    %12 = vector.broadcast %11 : vector<1x32xf32> to vector<8x32xf32>
    %13 = arith.addf %10, %12 : vector<8x32xf32>
    %cst_11 = arith.constant 0.000000e+00 : f32
    %14 = vector.broadcast %cst_11 : f32 to vector<8x32xf32>
    %15 = arith.maximumf %13, %14 : vector<8x32xf32>
    %16 = arith.truncf %15 : vector<8x32xf32> to vector<8x32xbf16>
    %c0_12 = arith.constant 0 : index
    %c0_13 = arith.constant 0 : index
    %17 = vector.load %arg6[%c0_12, %c0_13] : memref<32x128xbf16, #tpu.memory_space<vmem>>, vector<32x128xbf16>
    %cst_14 = arith.constant dense<0.000000e+00> : vector<8x128xf32>
    %18 = tpu.matmul %16, %17, %cst_14 {dimension_numbers = #tpu.dot_dimension_numbers<[1], [0], [0], [1], [0, 0, 1, 1], [], []>} : vector<8x32xbf16>, vector<32x128xbf16>, vector<8x128xf32> -> vector<8x128xf32>
    %c0_15 = arith.constant 0 : index
    %c0_16 = arith.constant 0 : index
    %19 = vector.load %arg7[%c0_15, %c0_16] : memref<1x128xf32, #tpu.memory_space<vmem>>, vector<1x128xf32>
    %20 = vector.broadcast %19 : vector<1x128xf32> to vector<8x128xf32>
    %21 = arith.addf %18, %20 : vector<8x128xf32>
    %cst_17 = arith.constant 0.000000e+00 : f32
    %22 = vector.broadcast %cst_17 : f32 to vector<8x128xf32>
    %23 = arith.subf %22, %21 : vector<8x128xf32>
    %24 = math.exp %23 : vector<8x128xf32>
    %cst_18 = arith.constant 1.000000e+00 : f32
    %25 = vector.broadcast %cst_18 : f32 to vector<8x128xf32>
    %26 = arith.addf %25, %24 : vector<8x128xf32>
    %27 = tpu.reciprocal %26 {approx = true} : vector<8x128xf32> -> vector<8x128xf32>
    %c0_19 = arith.constant 0 : index
    %c0_20 = arith.constant 0 : index
    %28 = vector.load %arg8[%c0_19, %c0_20] : memref<8x128xf32, #tpu.memory_space<vmem>>, vector<8x128xf32>
    tpu.vector_store %arg8[%c0_19, %c0_20], %27 {strides = array<i32>} : memref<8x128xf32, #tpu.memory_space<vmem>>, vector<8x128xf32>,
    return
  }
  func.func @transform_0(%arg0: i32) -> (i32, i32) {
    %c0_i32 = arith.constant 0 : i32
    %c0_i32_0 = arith.constant 0 : i32
    return %arg0, %c0_i32 : i32, i32
  }
  func.func @transform_1(%arg0: i32) -> (i32, i32) {
    %c0_i32 = arith.constant 0 : i32
    %c0_i32_0 = arith.constant 0 : i32
    %c0_i32_1 = arith.constant 0 : i32
    return %c0_i32, %c0_i32_0 : i32, i32
  }
  func.func @transform_2(%arg0: i32) -> (i32, i32) {
    %c0_i32 = arith.constant 0 : i32
    %c0_i32_0 = arith.constant 0 : i32
    %c0_i32_1 = arith.constant 0 : i32
    return %c0_i32, %c0_i32_0 : i32, i32
  }
  func.func @transform_3(%arg0: i32) -> (i32, i32) {
    %c0_i32 = arith.constant 0 : i32
    %c0_i32_0 = arith.constant 0 : i32
    %c0_i32_1 = arith.constant 0 : i32
    return %c0_i32, %c0_i32_0 : i32, i32
  }
  func.func @transform_4(%arg0: i32) -> (i32, i32) {
    %c0_i32 = arith.constant 0 : i32
    %c0_i32_0 = arith.constant 0 : i32
    %c0_i32_1 = arith.constant 0 : i32
    return %c0_i32, %c0_i32_0 : i32, i32
  }
  func.func @transform_5(%arg0: i32) -> (i32, i32) {
    %c0_i32 = arith.constant 0 : i32
    %c0_i32_0 = arith.constant 0 : i32
    %c0_i32_1 = arith.constant 0 : i32
    return %c0_i32, %c0_i32_0 : i32, i32
  }
  func.func @transform_6(%arg0: i32) -> (i32, i32) {
    %c0_i32 = arith.constant 0 : i32
    %c0_i32_0 = arith.constant 0 : i32
    %c0_i32_1 = arith.constant 0 : i32
    return %c0_i32, %c0_i32_0 : i32, i32
  }
  func.func @transform_7(%arg0: i32) -> (i32, i32) {
    %c0_i32 = arith.constant 0 : i32
    %c0_i32_0 = arith.constant 0 : i32
    return %arg0, %c0_i32 : i32, i32
  }
}

</mosaic_0001>

<llo_original>
// kernel: tpu_custom_call.1
$region0: #{tpu_custom_call.1}
  #allocation0 [shape = 'u32[]', space=smem, size = 0x4, offset = 0x4, fixed_abs, tag = 'smem constant byte address 0x4 - core index']
  #allocation1 [shape = 'u32[72,128]{1,0:T(1,128)}', space=vmem, size = 0x9000, scoped, tag = 'internal scratch']
  %s0 = inlined_call_operand.vmem [shape: bf16[8,4], index: 0, kind: input, shape index: {}]
  %s1 = inlined_call_operand.vmem [shape: bf16[4,32], index: 1, kind: input, shape index: {}]
  %s2 = inlined_call_operand.vmem [shape: f32[1,32], index: 2, kind: input, shape index: {}]
  %s3 = inlined_call_operand.hbm [shape: bf16[32,32], index: 3, kind: input, shape index: {}]
  %s4 = inlined_call_operand.vmem [shape: f32[1,32], index: 4, kind: input, shape index: {}]
  %s5 = inlined_call_operand.hbm [shape: bf16[32,128], index: 5, kind: input, shape index: {}]
  %s6 = inlined_call_operand.vmem [shape: f32[1,128], index: 6, kind: input, shape index: {}]
  %s7 = inlined_call_operand.hbm [shape: f32[8,128], index: 7, kind: output, shape index: {}]
  %s8 = sld [smem:[#allocation0]]
  $region46: #{tpu_custom_call.1} parent=0
    _
  %s10 = ssub.s32 1, %s8
  %s11 = scalar_select 0, %s10, %s8
  $region1: #{tpu_custom_call.1} parent=0
    #allocation2 [shape = 'u8[8192]{0}', space=vmem, size = 0x2000, scoped, tag = 'input window, operand 3, single buffered']
    #allocation3 [shape = 's32[1]{0}', space=sflag, size = 0x4, scoped, tag = 'scoped memory for tpu_custom_call.1']
    #allocation4 [shape = 's32[1]{0}', space=sflag, size = 0x4, scoped, tag = 'scoped memory for tpu_custom_call.1']
    #allocation5 [shape = 'u8[8192]{0}', space=vmem, size = 0x2000, scoped, tag = 'input window, operand 5, single buffered']
    #allocation6 [shape = 's32[1]{0}', space=sflag, size = 0x4, scoped, tag = 'scoped memory for tpu_custom_call.1']
    #allocation7 [shape = 'u8[4096]{0}', space=vmem, size = 0x1000, scoped, tag = 'output window, operand 0, single buffered']
    %12 = vsyncpa [#allocation3], 0
    %13 = vsyncpa [#allocation6], 0
    %14 = vsyncpa [#allocation4], 0
    // Predicated region
    $region2: #{tpu_custom_call.1} parent=1 // pred_check
      _
    $region3: #{tpu_custom_call.1} parent=1 // pred_check_branch
      %16 = sbr.rel (0) target = $region5
    $region4: #{tpu_custom_call.1} parent=1 // pred_region
      _
    $region5: #{tpu_custom_call.1} parent=1 // pred_fallthru
      _
    // Predicated region
    $region6: #{tpu_custom_call.1} parent=1 // pred_check
      _
    $region7: #{tpu_custom_call.1} parent=1 // pred_check_branch
      %18 = sbr.rel (0) target = $region9
    $region8: #{tpu_custom_call.1} parent=1 // pred_region
      _
    $region9: #{tpu_custom_call.1} parent=1 // pred_fallthru
      _
    // Predicated region
    $region10: #{tpu_custom_call.1} parent=1 // pred_check
      _
    $region11: #{tpu_custom_call.1} parent=1 // pred_check_branch
      %20 = sbr.rel (0) target = $region13
    $region12: #{tpu_custom_call.1} parent=1 // pred_region
      _
    $region13: #{tpu_custom_call.1} parent=1 // pred_fallthru
      _
    // Predicated region
    $region14: #{tpu_custom_call.1} parent=1 // pred_check
      _
    $region15: #{tpu_custom_call.1} parent=1 // pred_check_branch
      %22 = sbr.rel (0) target = $region17
    $region16: #{tpu_custom_call.1} parent=1 // pred_region
      %24 = vsyncadd [#allocation3], 0
      %s25 = sshll.u32 %s3, 4
      %s26 = int_to_ptr.hbm [resolvable:$true] %s25
      %s27 = sshll.u32 [#allocation2], 4
      %s28 = int_to_ptr.vmem [resolvable:$true] %s27
      %33 = dma.hbm_to_vmem [thread:$0]  %s26, 256, %s28, [#allocation3], 64, 64, 4
    $region17: #{tpu_custom_call.1} parent=1 // pred_fallthru
      _
    // Predicated region
    $region18: #{tpu_custom_call.1} parent=1 // pred_check
      _
    $region19: #{tpu_custom_call.1} parent=1 // pred_check_branch
      %35 = sbr.rel (0) target = $region21
    $region20: #{tpu_custom_call.1} parent=1 // pred_region
      _
    $region21: #{tpu_custom_call.1} parent=1 // pred_fallthru
      _
    // Predicated region
    $region22: #{tpu_custom_call.1} parent=1 // pred_check
      _
    $region23: #{tpu_custom_call.1} parent=1 // pred_check_branch
      %37 = sbr.rel (0) target = $region25
    $region24: #{tpu_custom_call.1} parent=1 // pred_region
      %39 = vsyncadd [#allocation6], 0
      %s40 = sshll.u32 %s5, 4
      %s41 = int_to_ptr.hbm [resolvable:$true] %s40
      %s42 = sshll.u32 [#allocation5], 4
      %s43 = int_to_ptr.vmem [resolvable:$true] %s42
      %48 = dma.hbm_to_vmem [thread:$0]  %s41, 256, %s43, [#allocation6], 64, 64, 4
    $region25: #{tpu_custom_call.1} parent=1 // pred_fallthru
      _
    // Predicated region
    $region26: #{tpu_custom_call.1} parent=1 // pred_check
      _
    $region27: #{tpu_custom_call.1} parent=1 // pred_check_branch
      %50 = sbr.rel (0) target = $region29
    $region28: #{tpu_custom_call.1} parent=1 // pred_region
      _
    $region29: #{tpu_custom_call.1} parent=1 // pred_fallthru
      _
    // Predicated region
    $region30: #{tpu_custom_call.1} parent=1 // pred_check
      _
    $region31: #{tpu_custom_call.1} parent=1 // pred_check_branch
      %52 = sbr.rel (0) target = $region33
    $region32: #{tpu_custom_call.1} parent=1 // pred_region
      %54 = dma.done [#allocation3], 256
    $region33: #{tpu_custom_call.1} parent=1 // pred_fallthru
      _
    // Predicated region
    $region34: #{tpu_custom_call.1} parent=1 // pred_check
      _
    $region35: #{tpu_custom_call.1} parent=1 // pred_check_branch
      %56 = sbr.rel (0) target = $region37
    $region36: #{tpu_custom_call.1} parent=1 // pred_region
      %58 = dma.done [#allocation6], 256
    $region37: #{tpu_custom_call.1} parent=1 // pred_fallthru
      _
    %v60 = vld [vmem:[%s0] sm:$0xf]
    %v61 = vld [vmem:[%s1] sm:$0x3]
    %v62 = vld [vmem:[%s2] sm:$0x1]
    %v64 = vperm.slane %v62, 0
    %vm66 = vcmask 31744
    %v68 = vsel %vm66, %v60, 0
    %vm70 = vcmask 1041408
    %v72 = vsel %vm70, %v61, 0
    %74 = vmatpush.bf16.msra.mxu0 0
    %75 = vmatpush.bf16.msra.mxu0 0
    %76 = vmatpush.bf16.msra.mxu0 0
    %77 = vmatpush.bf16.msra.mxu0 0
    %78 = vmatpush.bf16.msra.mxu0 0
    %79 = vmatpush.bf16.msra.mxu0 0
    %80 = vmatpush.bf16.msra.mxu0 0
    %81 = vmatpush.bf16.msra.mxu0 %v72
    %82 = vmatmul.bf16.gmra.mxu0 %v68
    %v83 = vpop.f32.mrf.mxu0
    %v84 = vadd.f32 %v64, %v83
    %v85 = vpop.f32.mrf.mxu0
    %86 = vdwg.mxu0
    %v87 = vmax.f32 %v84, 0.0
    %v88 = vpack.c.bf16 %v87, %v87
    %v89 = vld [vmem:[#allocation2] sm:$0xf]
    %v90 = vld [vmem:[#allocation2 + $0x4] sm:$0xf]
    %v91 = vld [vmem:[#allocation2 + $0x8] sm:$0xf]
    %v92 = vld [vmem:[#allocation2 + $0xc] sm:$0xf]
    %v93 = vld [vmem:[%s4] sm:$0x1]
    %v95 = vperm.slane %v93, 0
    %v101 = vunpack.c.l.b16 %v89
    %v102 = vunpack.c.l.b16 %v90
    %v103 = vunpack.c.l.b16 %v91
    %v104 = vunpack.c.l.b16 %v92
    %v105 = vpack.c.b16 %v102, %v101
    %v106 = vpack.c.b16 %v104, %v103
    %vm109 = vcmask 261120
    %v111 = vsel %vm109, %v88, 0
    %113 = vmatpush.bf16.msra.mxu0 0
    %114 = vmatpush.bf16.msra.mxu0 0
    %115 = vmatpush.bf16.msra.mxu0 0
    %116 = vmatpush.bf16.msra.mxu0 0
    %117 = vmatpush.bf16.msra.mxu0 0
    %118 = vmatpush.bf16.msra.mxu0 0
    %119 = vmatpush.bf16.msra.mxu0 %v106
    %120 = vmatpush.bf16.msra.mxu0 %v105
    %121 = vmatmul.bf16.gmra.mxu0 %v111
    %v122 = vpop.f32.mrf.mxu0
    %v123 = vadd.f32 %v95, %v122
    %v124 = vpop.f32.mrf.mxu0
    %125 = vdwg.mxu0
    %v126 = vmax.f32 %v123, 0.0
    %v127 = vpack.c.bf16 %v126, %v126
    %v128 = vld [vmem:[#allocation5] sm:$0xf]
    %v129 = vld [vmem:[#allocation5 + $0x4] sm:$0xf]
    %v130 = vld [vmem:[#allocation5 + $0x8] sm:$0xf]
    %v131 = vld [vmem:[#allocation5 + $0xc] sm:$0xf]
    %v132 = vld [vmem:[%s6] sm:$0x1]
    %v134 = vperm.slane %v132, 0
    %v140 = vunpack.c.l.b16 %v128
    %v141 = vunpack.c.l.b16 %v129
    %v142 = vunpack.c.l.b16 %v130
    %v143 = vunpack.c.l.b16 %v131
    %v144 = vpack.c.b16 %v141, %v140
    %v145 = vpack.c.b16 %v143, %v142
    %v149 = vsel %vm109, %v127, 0
    %151 = vmatpush.bf16.msra.mxu0 0
    %152 = vmatpush.bf16.msra.mxu0 0
    %153 = vmatpush.bf16.msra.mxu0 0
    %154 = vmatpush.bf16.msra.mxu0 0
    %155 = vmatpush.bf16.msra.mxu0 0
    %156 = vmatpush.bf16.msra.mxu0 0
    %157 = vmatpush.bf16.msra.mxu0 %v145
    %158 = vmatpush.bf16.msra.mxu0 %v144
    %159 = vmatmul.bf16.gmra.mxu0 %v149
    %v160 = vpop.f32.mrf.mxu0
    %v161 = vadd.f32 %v134, %v160
    %v162 = vpop.f32.mrf.mxu0
    %163 = vdwg.mxu0
    %v164 = vsub.f32 0.0, %v161
    %v165 = vmul.f32 %v164, 1.442695
    %v166 = vpow.pop %v165
    %v167 = vadd.f32 %v166, 1.0
    %v168 = vrcp.pop %v167
    %169 = vst [vmem:[#allocation7] sm:$0xff] %v168
    // Predicated region
    $region38: #{tpu_custom_call.1} parent=1 // pred_check
      _
    $region39: #{tpu_custom_call.1} parent=1 // pred_check_branch
      %171 = sbr.rel (0) target = $region41
    $region40: #{tpu_custom_call.1} parent=1 // pred_region
      %173 = vsyncadd [#allocation4], 0
      %s175 = sshll.u32 [#allocation7], 4
      %s176 = int_to_ptr.vmem [resolvable:$true] %s175
      %s177 = sshll.u32 %s7, 4
      %s178 = int_to_ptr.hbm [resolvable:$true] %s177
      %180 = dma.vmem_to_hbm [thread:$0]  %s176, 128, %s178, [#allocation4]
    $region41: #{tpu_custom_call.1} parent=1 // pred_fallthru
      _
    // Predicated region
    $region42: #{tpu_custom_call.1} parent=1 // pred_check
      _
    $region43: #{tpu_custom_call.1} parent=1 // pred_check_branch
      %182 = sbr.rel (0) target = $region45
    $region44: #{tpu_custom_call.1} parent=1 // pred_region
      %184 = dma.done [#allocation4], 128
    $region45: #{tpu_custom_call.1} parent=1 // pred_fallthru
      _
    %185 = vsyncpa [#allocation3], 1
    %186 = vsyncpa [#allocation6], 1
    %187 = vsyncpa [#allocation4], 1

</llo_original>
